<compile_context>
chip_gen: v5e
topology: v5e:2x2
jax: 0.10.0
libtpu: 0.0.40
codegen_flags: <defaults>
</compile_context>

<pallas_src>
import functools

import jax
import jax.numpy as jnp
from jax.experimental import pallas as pl
from jax.experimental.pallas import tpu as pltpu


def _scale_kernel(x_ref, o_ref, *, scale):
    # Single VPU multiply over the whole VMEM tile; the kernel is HBM-bound.
    s = jnp.asarray(scale, dtype=o_ref.dtype)
    o_ref[...] = x_ref[...] * s


def _vmem_capacity_bytes() -> int:
    try:
        return int(pltpu.get_tpu_info().vmem_capacity_bytes)
    except Exception:  # pragma: no cover - conservative (v7x-sized) default
        return 64 << 20


def _scale_flat(flat: jax.Array, scale: float, donate_input: bool) -> jax.Array:
    """Scale a 1D array whose length is a multiple of 128 with a Pallas kernel."""
    total = flat.shape[0]
    dtype = flat.dtype
    itemsize = jnp.dtype(dtype).itemsize

    # dtype-aware sublane packing: f32 -> 8 rows/vreg, bf16 -> 16, int8/fp8 -> 32.
    packing = max(1, 4 // itemsize)
    row_align = 8 * packing

    # Lane-dense layout, preferring a shape with >= row_align rows so the
    # sublane axis is dense too; fall back to the widest divisor for tiny inputs.
    cols = None
    for cand in (8192, 4096, 2048, 1024, 512, 256, 128):
        if total % cand == 0 and total // cand >= row_align:
            cols = cand
            break
    if cols is None:
        for cand in (8192, 4096, 2048, 1024, 512, 256, 128):
            if total % cand == 0:
                cols = cand
                break
    rows = total // cols
    x2d = flat.reshape(rows, cols)

    # Generation-aware tile size / scoped VMEM cap.
    vmem_cap = _vmem_capacity_bytes()
    if vmem_cap <= (64 << 20):
        # v7x: 64 MiB VMEM, ~3.2 TB/s HBM -> bigger tiles to amortize step cost.
        target_tile_bytes = 10 << 20     # 4x double-buffered = 40 MiB < 48 MiB cap
        vmem_cap_limit = 48 << 20
    else:
        # v5e / v6e: 128 MiB physical VMEM.
        target_tile_bytes = 8 << 20
        vmem_cap_limit = 96 << 20

    tile_rows = max(
        row_align,
        ((target_tile_bytes // (cols * itemsize)) // row_align) * row_align,
    )
    if tile_rows >= rows:
        # Whole array fits in one tile.  If it is large enough that per-step
        # overhead is negligible, split into >=2 tiles so the "parallel" grid
        # axis can shard across v7x's two TensorCores.
        if rows >= 2 * row_align and rows * cols * itemsize > (2 << 20):
            tile_rows = pl.cdiv(pl.cdiv(rows, 2), row_align) * row_align
        else:
            tile_rows = rows  # single full-extent block
    grid = (pl.cdiv(rows, tile_rows),)

    tile_bytes = tile_rows * cols * itemsize
    vmem_limit = int(min(max(4 * tile_bytes + (4 << 20), 32 << 20), vmem_cap_limit))

    kernel = functools.partial(_scale_kernel, scale=float(scale))

    out2d = pl.pallas_call(
        kernel,
        out_shape=jax.ShapeDtypeStruct((rows, cols), dtype),
        grid_spec=pltpu.PrefetchScalarGridSpec(
            num_scalar_prefetch=0,
            grid=grid,
            in_specs=[pl.BlockSpec((tile_rows, cols), lambda i: (i, 0))],
            out_specs=pl.BlockSpec((tile_rows, cols), lambda i: (i, 0)),
        ),
        compiler_params=pltpu.CompilerParams(
            dimension_semantics=("parallel",),
            vmem_limit_bytes=vmem_limit,
        ),
        cost_estimate=pl.CostEstimate(
            flops=total,
            transcendentals=0,
            bytes_accessed=2 * total * itemsize,
        ),
        input_output_aliases={0: 0} if donate_input else {},
    )(x2d)

    return out2d.reshape(-1)


def scale_feat(
    x: jax.Array, scale_factor: float = 50.0, *, donate_input: bool = False
) -> jax.Array:
    """Pallas TPU implementation of ScaleFeat.forward (input * scale)."""
    orig_shape = x.shape
    total = 1
    for d in orig_shape:
        total *= d
    if total == 0:
        return x  # nothing to do for empty tensors

    # PyTorch promotes int * python-float to float; handle that (rare) case
    # with a plain fused XLA multiply.  The Pallas path is dtype-preserving.
    if not jnp.issubdtype(x.dtype, jnp.floating):
        return x * scale_factor

    flat = x.reshape(-1)
    rem = total % 128
    if rem == 0:
        out_flat = _scale_flat(flat, scale_factor, donate_input)
    elif total < 128:
        # Too small for a kernel launch to pay off; one fused XLA op.
        out_flat = flat * jnp.asarray(scale_factor, dtype=x.dtype)
    else:
        # Avoid the pad + slice extra HBM passes: kernel over the
        # multiple-of-128 prefix, trivial jnp op on the <128-element tail.
        main = total - rem
        head = _scale_flat(flat[:main], scale_factor, donate_input)
        tail = flat[main:] * jnp.asarray(scale_factor, dtype=x.dtype)
        out_flat = jnp.concatenate([head, tail])

    return out_flat.reshape(orig_shape)


if __name__ == "__main__":
    key = jax.random.PRNGKey(0)
    # NCHW input, consistent with PyTorch conv-style feature maps.
    x = jax.random.normal(key, (2, 4, 16, 16), dtype=jnp.float32)

    scale_factor = 50.0
    out = scale_feat(x, scale_factor)
    out = jax.block_until_ready(out)

    # Correctness check against the trivial reference.
    ref = x * scale_factor
    assert out.shape == x.shape
    assert out.dtype == x.dtype
    assert jnp.allclose(out, ref, rtol=1e-6, atol=1e-6)

    print("KERNEL_OK")
</pallas_src>

<mosaic_0001>
module attributes {stable_mosaic.version = 11 : i64} {
  func.func @_scale_kernel(%arg0: i32, %arg1: memref<8x256xf32, #tpu.memory_space<vmem>>, %arg2: memref<8x256xf32, #tpu.memory_space<vmem>>) attributes {dimension_semantics = [#tpu.dimension_semantics<parallel>], iteration_bounds = array<i64: 1>, scalar_prefetch = 0 : i64, scratch_operands = 0 : i64, tpu.core_type = #tpu.core_type<tc>, window_params = [{transform_indices = @transform_0, window_bounds = array<i64: 8, 256>}, {transform_indices = @transform_1, window_bounds = array<i64: 8, 256>}]} {
    %c0 = arith.constant 0 : index
    %c0_0 = arith.constant 0 : index
    %0 = vector.load %arg1[%c0, %c0_0] : memref<8x256xf32, #tpu.memory_space<vmem>>, vector<8x256xf32>
    %cst = arith.constant 5.000000e+01 : f32
    %1 = vector.broadcast %cst : f32 to vector<8x256xf32>
    %2 = arith.mulf %0, %1 : vector<8x256xf32>
    %c0_1 = arith.constant 0 : index
    %c0_2 = arith.constant 0 : index
    %3 = vector.load %arg2[%c0_1, %c0_2] : memref<8x256xf32, #tpu.memory_space<vmem>>, vector<8x256xf32>
    tpu.vector_store %arg2[%c0_1, %c0_2], %2 {strides = array<i32>} : memref<8x256xf32, #tpu.memory_space<vmem>>, vector<8x256xf32>,
    return
  }
  func.func @transform_0(%arg0: i32) -> (i32, i32) {
    %c0_i32 = arith.constant 0 : i32
    %c0_i32_0 = arith.constant 0 : i32
    return %arg0, %c0_i32 : i32, i32
  }
  func.func @transform_1(%arg0: i32) -> (i32, i32) {
    %c0_i32 = arith.constant 0 : i32
    %c0_i32_0 = arith.constant 0 : i32
    return %arg0, %c0_i32 : i32, i32
  }
}

</mosaic_0001>

<llo_original>
// kernel: tpu_custom_call.1
$region0: #{tpu_custom_call.1}
  #allocation0 [shape = 'u32[]', space=smem, size = 0x4, offset = 0x4, fixed_abs, tag = 'smem constant byte address 0x4 - core index']
  #allocation1 [shape = 'u32[72,128]{1,0:T(1,128)}', space=vmem, size = 0x9000, scoped, tag = 'internal scratch']
  %s0 = inlined_call_operand.hbm [shape: f32[8,256], index: 0, kind: input, shape index: {}]
  %s1 = inlined_call_operand.hbm [shape: f32[8,256], index: 1, kind: output, shape index: {}]
  %s2 = sld [smem:[#allocation0]]
  $region18: #{tpu_custom_call.1} parent=0
    _
  %s4 = ssub.s32 1, %s2
  %s5 = scalar_select 0, %s4, %s2
  $region1: #{tpu_custom_call.1} parent=0
    #allocation2 [shape = 'u8[8192]{0}', space=vmem, size = 0x2000, scoped, tag = 'input window, operand 0, single buffered']
    #allocation3 [shape = 's32[1]{0}', space=sflag, size = 0x4, scoped, tag = 'scoped memory for tpu_custom_call.1']
    #allocation4 [shape = 's32[1]{0}', space=sflag, size = 0x4, scoped, tag = 'scoped memory for tpu_custom_call.1']
    #allocation5 [shape = 'u8[8192]{0}', space=vmem, size = 0x2000, scoped, tag = 'output window, operand 0, single buffered']
    %6 = vsyncpa [#allocation3], 0
    %7 = vsyncpa [#allocation4], 0
    // Predicated region
    $region2: #{tpu_custom_call.1} parent=1 // pred_check
      _
    $region3: #{tpu_custom_call.1} parent=1 // pred_check_branch
      %9 = sbr.rel (0) target = $region5
    $region4: #{tpu_custom_call.1} parent=1 // pred_region
      %11 = vsyncadd [#allocation3], 0
      %s13 = sshll.u32 %s0, 4
      %s14 = int_to_ptr.hbm [resolvable:$true] %s13
      %s15 = sshll.u32 [#allocation2], 4
      %s16 = int_to_ptr.vmem [resolvable:$true] %s15
      %18 = dma.hbm_to_vmem [thread:$0]  %s14, 256, %s16, [#allocation3]
    $region5: #{tpu_custom_call.1} parent=1 // pred_fallthru
      _
    // Predicated region
    $region6: #{tpu_custom_call.1} parent=1 // pred_check
      _
    $region7: #{tpu_custom_call.1} parent=1 // pred_check_branch
      %20 = sbr.rel (0) target = $region9
    $region8: #{tpu_custom_call.1} parent=1 // pred_region
      %22 = dma.done [#allocation3], 256
    $region9: #{tpu_custom_call.1} parent=1 // pred_fallthru
      _
    %v23 = vld [vmem:[#allocation2] sm:$0xff]
    %v24 = vld [vmem:[#allocation2 + $0x8] sm:$0xff]
    %v25 = vmul.f32 %v23, 50.0
    %v26 = vmul.f32 %v24, 50.0
    %27 = vst [vmem:[#allocation5] sm:$0xff] %v25
    %28 = vst [vmem:[#allocation5 + $0x8] sm:$0xff] %v26
    // Predicated region
    $region10: #{tpu_custom_call.1} parent=1 // pred_check
      _
    $region11: #{tpu_custom_call.1} parent=1 // pred_check_branch
      %30 = sbr.rel (0) target = $region13
    $region12: #{tpu_custom_call.1} parent=1 // pred_region
      %32 = vsyncadd [#allocation4], 0
      %s34 = sshll.u32 [#allocation5], 4
      %s35 = int_to_ptr.vmem [resolvable:$true] %s34
      %s36 = sshll.u32 %s1, 4
      %s37 = int_to_ptr.hbm [resolvable:$true] %s36
      %39 = dma.vmem_to_hbm [thread:$0]  %s35, 256, %s37, [#allocation4]
    $region13: #{tpu_custom_call.1} parent=1 // pred_fallthru
      _
    // Predicated region
    $region14: #{tpu_custom_call.1} parent=1 // pred_check
      _
    $region15: #{tpu_custom_call.1} parent=1 // pred_check_branch
      %41 = sbr.rel (0) target = $region17
    $region16: #{tpu_custom_call.1} parent=1 // pred_region
      %43 = dma.done [#allocation4], 256
    $region17: #{tpu_custom_call.1} parent=1 // pred_fallthru
      _
    %44 = vsyncpa [#allocation3], 1
    %45 = vsyncpa [#allocation4], 1

</llo_original>
